<compile_context>
chip_gen: v6e
topology: v6e:2x2x1
jax: 0.10.0
libtpu: 0.0.40
codegen_flags: <defaults>
</compile_context>

<pallas_src>
import functools

import jax
import jax.numpy as jnp
from jax.experimental import pallas as pl
from jax.experimental.pallas import tpu as pltpu


# --------------------------------------------------------------------------- #
# Kernels
# --------------------------------------------------------------------------- #
def _mlp_logits_kernel(x_ref, w1_ref, b1_ref, w2_ref, b2_ref, logits_ref):
    # x_ref: (TB, F) f32   w1_ref: (F, H) bf16   b1_ref: (1, H) f32
    # w2_ref: (H, Cp) bf16 (lane-padded)   b2_ref: (1, Cp) f32
    # logits_ref: (TB, C) f32   (only the real classes go back to HBM)
    x = x_ref[...].astype(jnp.bfloat16)                       # free VPU cast
    h = jnp.dot(x, w1_ref[...], preferred_element_type=jnp.float32)
    h = jnp.maximum(h + b1_ref[...], 0.0)                     # bias + ReLU in f32
    logits = jnp.dot(h.astype(jnp.bfloat16), w2_ref[...],
                     preferred_element_type=jnp.float32) + b2_ref[...]
    # Drop the zero padding columns before the store: HBM sees only (TB, C).
    logits_ref[...] = logits[:, : logits_ref.shape[-1]]


def _mlp_predict_kernel(x_ref, w1_ref, b1_ref, w2_ref, b2_ref, preds_ref, *,
                        num_classes):
    # Same forward pass, but only the argmax (first maximal index, matching
    # torch/np tie-breaking) is written back: 4 B/row of HBM writeback.
    x = x_ref[...].astype(jnp.bfloat16)
    h = jnp.dot(x, w1_ref[...], preferred_element_type=jnp.float32)
    h = jnp.maximum(h + b1_ref[...], 0.0)
    logits = jnp.dot(h.astype(jnp.bfloat16), w2_ref[...],
                     preferred_element_type=jnp.float32) + b2_ref[...]
    c_pad = logits.shape[-1]
    col = jax.lax.broadcasted_iota(jnp.int32, logits.shape, 1)
    valid = col < num_classes
    masked = jnp.where(valid, logits, -jnp.inf)               # ignore padded cols
    m = jnp.max(masked, axis=1, keepdims=True)
    cand = jnp.where((masked == m) & valid, col, c_pad)
    preds_ref[...] = jnp.min(cand, axis=1, keepdims=True).astype(jnp.int32)


# --------------------------------------------------------------------------- #
# Wrappers
# --------------------------------------------------------------------------- #
def _round_up(x, m):
    return ((x + m - 1) // m) * m


def _pick_tile(n, tile_b):
    """Batch tile: large (amortize ~0.35us/step), multiple of 8, and a grid
    length that is >= 2 and even where possible so both v7x TensorCores get
    balanced work (no-op on single-TC v5e/v6e)."""
    tile = min(tile_b, _round_up(n, 8))
    tile = max(8, (tile // 8) * 8)
    grid_len = pl.cdiv(n, tile)
    if grid_len == 1 and n > 8:
        grid_len = 2
    elif grid_len > 1 and grid_len % 2 == 1:
        grid_len += 1
    return max(8, _round_up(pl.cdiv(n, grid_len), 8))


def _prep_params(w1, b1, w2, b2):
    F, H = w1.shape
    C = w2.shape[1]
    C_pad = _round_up(C, 128)            # lane padding for the MXU (VMEM only)
    w1_b = w1.astype(jnp.bfloat16)
    w2_p = jnp.pad(w2.astype(jnp.bfloat16), ((0, 0), (0, C_pad - C)))
    b1_f = b1.astype(jnp.float32).reshape(1, H)
    b2_p = jnp.pad(b2.astype(jnp.float32).reshape(1, C), ((0, 0), (0, C_pad - C)))
    return w1_b, b1_f, w2_p, b2_p, F, H, C, C_pad


def _in_specs(tile, F, H, C_pad):
    return [
        pl.BlockSpec((tile, F), lambda i: (i, 0)),      # X tile (streams, f32)
        pl.BlockSpec((F, H), lambda i: (0, 0)),         # W1 (grid-invariant)
        pl.BlockSpec((1, H), lambda i: (0, 0)),         # b1
        pl.BlockSpec((H, C_pad), lambda i: (0, 0)),     # W2 (lane-padded)
        pl.BlockSpec((1, C_pad), lambda i: (0, 0)),     # b2 (lane-padded)
    ]


def sk_torch_forward(x, w1, b1, w2, b2, *, tile_b=2048):
    """forward(): returns logits [N, C] f32."""
    N = x.shape[0]
    w1_b, b1_f, w2_p, b2_p, F, H, C, C_pad = _prep_params(w1, b1, w2, b2)
    tile = _pick_tile(N, tile_b)
    return pl.pallas_call(
        _mlp_logits_kernel,
        out_shape=jax.ShapeDtypeStruct((N, C), jnp.float32),
        grid_spec=pltpu.PrefetchScalarGridSpec(
            num_scalar_prefetch=0,
            grid=(pl.cdiv(N, tile),),
            in_specs=_in_specs(tile, F, H, C_pad),
            out_specs=pl.BlockSpec((tile, C), lambda i: (i, 0)),
        ),
        compiler_params=pltpu.CompilerParams(
            dimension_semantics=("parallel",),
        ),
    )(x.astype(jnp.float32), w1_b, b1_f, w2_p, b2_p)


def sk_torch_predict(x, w1, b1, w2, b2, *, tile_b=2048):
    """predict(): sklearn-style argmax(dim=1, keepdim=True), int32 [N, 1]."""
    N = x.shape[0]
    w1_b, b1_f, w2_p, b2_p, F, H, C, C_pad = _prep_params(w1, b1, w2, b2)
    tile = _pick_tile(N, tile_b)
    return pl.pallas_call(
        functools.partial(_mlp_predict_kernel, num_classes=C),
        out_shape=jax.ShapeDtypeStruct((N, 1), jnp.int32),
        grid_spec=pltpu.PrefetchScalarGridSpec(
            num_scalar_prefetch=0,
            grid=(pl.cdiv(N, tile),),
            in_specs=_in_specs(tile, F, H, C_pad),
            out_specs=pl.BlockSpec((tile, 1), lambda i: (i, 0)),
        ),
        compiler_params=pltpu.CompilerParams(
            dimension_semantics=("parallel",),
        ),
    )(x.astype(jnp.float32), w1_b, b1_f, w2_p, b2_p)


# --------------------------------------------------------------------------- #
# Reference (matches kernel numerics: bf16 operands, f32 accumulation)
# --------------------------------------------------------------------------- #
def _reference(x, w1, b1, w2, b2):
    xb, w1b, w2b = (a.astype(jnp.bfloat16) for a in (x, w1, w2))
    h = jnp.maximum(jnp.dot(xb, w1b, preferred_element_type=jnp.float32)
                    + b1.astype(jnp.float32), 0.0)
    logits = (jnp.dot(h.astype(jnp.bfloat16), w2b,
                      preferred_element_type=jnp.float32)
              + b2.astype(jnp.float32))
    preds = jnp.argmax(logits, axis=1, keepdims=True).astype(jnp.int32)
    return logits, preds


if __name__ == "__main__":
    # Small tabular-estimator shapes: batch, in_dim, hidden, out_dim (classes).
    # N is NOT a multiple of the tile -> exercises the masked last block.
    N, F, H, C = 200, 16, 32, 10

    key = jax.random.PRNGKey(0)
    kx, k1, k2, k3, k4 = jax.random.split(key, 5)
    x  = jax.random.normal(kx, (N, F), dtype=jnp.float32)
    w1 = jax.random.normal(k1, (F, H), dtype=jnp.float32) * (1.0 / jnp.sqrt(F))
    b1 = jax.random.normal(k2, (1, H), dtype=jnp.float32) * 0.01
    w2 = jax.random.normal(k3, (H, C), dtype=jnp.float32) * (1.0 / jnp.sqrt(H))
    b2 = jax.random.normal(k4, (1, C), dtype=jnp.float32) * 0.01

    logits = jax.block_until_ready(sk_torch_forward(x, w1, b1, w2, b2))
    preds  = jax.block_until_ready(sk_torch_predict(x, w1, b1, w2, b2))

    ref_logits, ref_preds = _reference(x, w1, b1, w2, b2)
    assert logits.shape == (N, C) and preds.shape == (N, 1)
    assert jnp.allclose(logits, ref_logits, atol=2e-3, rtol=2e-3)
    assert jnp.array_equal(
        preds, jnp.argmax(logits, axis=1, keepdims=True).astype(jnp.int32))
    assert jnp.array_equal(preds, ref_preds)

    print("KERNEL_OK")
</pallas_src>

<mosaic_0001>
module attributes {stable_mosaic.version = 11 : i64} {
  func.func @_mlp_logits_kernel(%arg0: i32, %arg1: memref<104x16xf32, #tpu.memory_space<vmem>>, %arg2: memref<16x32xbf16, #tpu.memory_space<vmem>>, %arg3: memref<1x32xf32, #tpu.memory_space<vmem>>, %arg4: memref<32x128xbf16, #tpu.memory_space<vmem>>, %arg5: memref<1x128xf32, #tpu.memory_space<vmem>>, %arg6: memref<104x10xf32, #tpu.memory_space<vmem>>) attributes {dimension_semantics = [#tpu.dimension_semantics<parallel>], iteration_bounds = array<i64: 2>, scalar_prefetch = 0 : i64, scratch_operands = 0 : i64, tpu.core_type = #tpu.core_type<tc>, window_params = [{transform_indices = @transform_0, window_bounds = array<i64: 104, 16>}, {pipeline_mode = #tpu.pipeline_mode<synchronous>, transform_indices = @transform_1, window_bounds = array<i64: 16, 32>}, {pipeline_mode = #tpu.pipeline_mode<synchronous>, transform_indices = @transform_2, window_bounds = array<i64: 1, 32>}, {pipeline_mode = #tpu.pipeline_mode<synchronous>, transform_indices = @transform_3, window_bounds = array<i64: 32, 128>}, {pipeline_mode = #tpu.pipeline_mode<synchronous>, transform_indices = @transform_4, window_bounds = array<i64: 1, 128>}, {transform_indices = @transform_5, window_bounds = array<i64: 104, 10>}]} {
    %c0 = arith.constant 0 : index
    %c0_0 = arith.constant 0 : index
    %0 = vector.load %arg1[%c0, %c0_0] : memref<104x16xf32, #tpu.memory_space<vmem>>, vector<104x16xf32>
    %1 = arith.truncf %0 : vector<104x16xf32> to vector<104x16xbf16>
    %c0_1 = arith.constant 0 : index
    %c0_2 = arith.constant 0 : index
    %2 = vector.load %arg2[%c0_1, %c0_2] : memref<16x32xbf16, #tpu.memory_space<vmem>>, vector<16x32xbf16>
    %cst = arith.constant dense<0.000000e+00> : vector<104x32xf32>
    %3 = tpu.matmul %1, %2, %cst {dimension_numbers = #tpu.dot_dimension_numbers<[1], [0], [0], [1], [0, 0, 1, 1], [], []>} : vector<104x16xbf16>, vector<16x32xbf16>, vector<104x32xf32> -> vector<104x32xf32>
    %c0_3 = arith.constant 0 : index
    %c0_4 = arith.constant 0 : index
    %4 = vector.load %arg3[%c0_3, %c0_4] : memref<1x32xf32, #tpu.memory_space<vmem>>, vector<1x32xf32>
    %5 = vector.broadcast %4 : vector<1x32xf32> to vector<104x32xf32>
    %6 = arith.addf %3, %5 : vector<104x32xf32>
    %cst_5 = arith.constant 0.000000e+00 : f32
    %7 = vector.broadcast %cst_5 : f32 to vector<104x32xf32>
    %8 = arith.maximumf %6, %7 : vector<104x32xf32>
    %9 = arith.truncf %8 : vector<104x32xf32> to vector<104x32xbf16>
    %c0_6 = arith.constant 0 : index
    %c0_7 = arith.constant 0 : index
    %10 = vector.load %arg4[%c0_6, %c0_7] : memref<32x128xbf16, #tpu.memory_space<vmem>>, vector<32x128xbf16>
    %cst_8 = arith.constant dense<0.000000e+00> : vector<104x128xf32>
    %11 = tpu.matmul %9, %10, %cst_8 {dimension_numbers = #tpu.dot_dimension_numbers<[1], [0], [0], [1], [0, 0, 1, 1], [], []>} : vector<104x32xbf16>, vector<32x128xbf16>, vector<104x128xf32> -> vector<104x128xf32>
    %c0_9 = arith.constant 0 : index
    %c0_10 = arith.constant 0 : index
    %12 = vector.load %arg5[%c0_9, %c0_10] : memref<1x128xf32, #tpu.memory_space<vmem>>, vector<1x128xf32>
    %13 = vector.broadcast %12 : vector<1x128xf32> to vector<104x128xf32>
    %14 = arith.addf %11, %13 : vector<104x128xf32>
    %15 = vector.extract_strided_slice %14 {offsets = [0, 0], sizes = [104, 10], strides = [1, 1]} : vector<104x128xf32> to vector<104x10xf32>
    %c0_11 = arith.constant 0 : index
    %c0_12 = arith.constant 0 : index
    %16 = vector.load %arg6[%c0_11, %c0_12] : memref<104x10xf32, #tpu.memory_space<vmem>>, vector<104x10xf32>
    tpu.vector_store %arg6[%c0_11, %c0_12], %15 {strides = array<i32>} : memref<104x10xf32, #tpu.memory_space<vmem>>, vector<104x10xf32>,
    return
  }
  func.func @transform_0(%arg0: i32) -> (i32, i32) {
    %c0_i32 = arith.constant 0 : i32
    %c0_i32_0 = arith.constant 0 : i32
    return %arg0, %c0_i32 : i32, i32
  }
  func.func @transform_1(%arg0: i32) -> (i32, i32) {
    %c0_i32 = arith.constant 0 : i32
    %c0_i32_0 = arith.constant 0 : i32
    %c0_i32_1 = arith.constant 0 : i32
    return %c0_i32, %c0_i32_0 : i32, i32
  }
  func.func @transform_2(%arg0: i32) -> (i32, i32) {
    %c0_i32 = arith.constant 0 : i32
    %c0_i32_0 = arith.constant 0 : i32
    %c0_i32_1 = arith.constant 0 : i32
    return %c0_i32, %c0_i32_0 : i32, i32
  }
  func.func @transform_3(%arg0: i32) -> (i32, i32) {
    %c0_i32 = arith.constant 0 : i32
    %c0_i32_0 = arith.constant 0 : i32
    %c0_i32_1 = arith.constant 0 : i32
    return %c0_i32, %c0_i32_0 : i32, i32
  }
  func.func @transform_4(%arg0: i32) -> (i32, i32) {
    %c0_i32 = arith.constant 0 : i32
    %c0_i32_0 = arith.constant 0 : i32
    %c0_i32_1 = arith.constant 0 : i32
    return %c0_i32, %c0_i32_0 : i32, i32
  }
  func.func @transform_5(%arg0: i32) -> (i32, i32) {
    %c0_i32 = arith.constant 0 : i32
    %c0_i32_0 = arith.constant 0 : i32
    return %arg0, %c0_i32 : i32, i32
  }
}

</mosaic_0001>

<llo_original>
// kernel: tpu_custom_call.1
$region0: #{tpu_custom_call.1}
  #allocation0 [shape = 'u32[]', space=smem, size = 0x4, offset = 0x4, fixed_abs, tag = 'smem constant byte address 0x4 - core index']
  #allocation1 [shape = 'u32[144,128]{1,0:T(1,128)}', space=vmem, size = 0x12000, scoped, tag = 'internal scratch']
  %s0 = inlined_call_operand.vmem [shape: f32[200,16], index: 0, kind: input, shape index: {}]
  %s1 = inlined_call_operand.vmem [shape: bf16[16,32], index: 1, kind: input, shape index: {}]
  %s2 = inlined_call_operand.vmem [shape: f32[1,32], index: 2, kind: input, shape index: {}]
  %s3 = inlined_call_operand.vmem [shape: bf16[32,128], index: 3, kind: input, shape index: {}]
  %s4 = inlined_call_operand.vmem [shape: f32[1,128], index: 4, kind: input, shape index: {}]
  %s5 = inlined_call_operand.vmem [shape: f32[200,10], index: 5, kind: output, shape index: {}]
  %s6 = sld [smem:[#allocation0]]
  $region101: #{tpu_custom_call.1} parent=0
    _
  %s8 = ssub.s32 1, %s6
  %s9 = scalar_select 0, %s8, %s6
  $region1: #{tpu_custom_call.1} parent=0
    #allocation2 [shape = 'u8[106496]{0}', space=vmem, size = 0x1a000, scoped, tag = 'output window, operand 0']
    loop: start=0, step=1, limit=4
    $region2: #{tpu_custom_call.1} parent=1 // loop_pre_header
      _
    $region3: #{tpu_custom_call.1} parent=1 // loop_header
      %s11 = sphi 0, %s15
      %p12 = scmp.ge.s32.totalorder %s11, 4
      %s21 = sphi 0, %s23
      %s24 = sphi 0, %s21
      %s25 = sphi 0, %s24
      %s41 = sphi 0, %s25
      %s45 = sphi 0, %s45
      %s47 = sphi 0, %s45
      %s48 = sphi 0, %s47
      %s62 = sphi 0, %s48
      %s66 = sphi 0, %s66
      %s68 = sphi 0, %s66
      %s69 = sphi 0, %s68
      %s83 = sphi 0, %s69
      %s87 = sphi 0, %s87
      %s89 = sphi 0, %s87
      %s90 = sphi 0, %s89
      %s104 = sphi 0, %s90
      %s108 = sphi 0, %s108
      %s110 = sphi 0, %s108
      %s111 = sphi 0, %s110
      %s125 = sphi 0, %s111
      %s131 = sphi 0, %s133
      %s134 = sphi 0, %s131
      %s135 = sphi 0, %s134
      %s151 = sphi 0, %s135
    $region4: #{tpu_custom_call.1} parent=1 // loop_header_branch
      %14 = sbr.rel (%p12) target = $region8
    $region5: #{tpu_custom_call.1} parent=1 // loop_body
      %s16 = ssub.s32 %s11, 1
      %s17 = ssub.s32 %s11, 2
      %s18 = sadd.s32 %s11, 1
      %s19 = ssub.s32 %s11, %s18
      %p20 = scmp.eq.s32.totalorder %s19, 0
      %s22 = sadd.s32 %s21, 1
      %s23 = scalar_select %p20, %s21, %s22
      %p26 = pneg %p20
      %p27 = scmp.eq.s32.totalorder %s11, 1
      %p28 = por %p26, %p27
      %p29 = scmp.ne.s32.totalorder %s21, %s24
      %p30 = scmp.eq.s32.totalorder %s11, 0
      %p31 = por %p29, %p30
      %p32 = scmp.ne.s32.totalorder %s21, %s24
      %p33 = scmp.eq.s32.totalorder %s16, 1
      %p34 = por %p32, %p33
      %p35 = scmp.ne.s32.totalorder %s24, %s25
      %p36 = scmp.eq.s32.totalorder %s16, 0
      %p37 = por %p35, %p36
      %p38 = scmp.ne.s32.totalorder %s24, %s25
      %p39 = scmp.eq.s32.totalorder %s17, 1
      %p40 = por %p38, %p39
      %p42 = scmp.ne.s32.totalorder %s25, %s41
      %p43 = scmp.eq.s32.totalorder %s17, 0
      %p44 = por %p42, %p43
      %s46 = sadd.s32 %s45, 1
      %p49 = scmp.eq.s32.totalorder %s11, 1
      %p50 = scmp.ne.s32.totalorder %s45, %s47
      %p51 = scmp.eq.s32.totalorder %s11, 0
      %p52 = por %p50, %p51
      %p53 = scmp.ne.s32.totalorder %s45, %s47
      %p54 = scmp.eq.s32.totalorder %s16, 1
      %p55 = por %p53, %p54
      %p56 = scmp.ne.s32.totalorder %s47, %s48
      %p57 = scmp.eq.s32.totalorder %s16, 0
      %p58 = por %p56, %p57
      %p59 = scmp.ne.s32.totalorder %s47, %s48
      %p60 = scmp.eq.s32.totalorder %s17, 1
      %p61 = por %p59, %p60
      %p63 = scmp.ne.s32.totalorder %s48, %s62
      %p64 = scmp.eq.s32.totalorder %s17, 0
      %p65 = por %p63, %p64
      %s67 = sadd.s32 %s66, 1
      %p70 = scmp.eq.s32.totalorder %s11, 1
      %p71 = scmp.ne.s32.totalorder %s66, %s68
      %p72 = scmp.eq.s32.totalorder %s11, 0
      %p73 = por %p71, %p72
      %p74 = scmp.ne.s32.totalorder %s66, %s68
      %p75 = scmp.eq.s32.totalorder %s16, 1
      %p76 = por %p74, %p75
      %p77 = scmp.ne.s32.totalorder %s68, %s69
      %p78 = scmp.eq.s32.totalorder %s16, 0
      %p79 = por %p77, %p78
      %p80 = scmp.ne.s32.totalorder %s68, %s69
      %p81 = scmp.eq.s32.totalorder %s17, 1
      %p82 = por %p80, %p81
      %p84 = scmp.ne.s32.totalorder %s69, %s83
      %p85 = scmp.eq.s32.totalorder %s17, 0
      %p86 = por %p84, %p85
      %s88 = sadd.s32 %s87, 1
      %p91 = scmp.eq.s32.totalorder %s11, 1
      %p92 = scmp.ne.s32.totalorder %s87, %s89
      %p93 = scmp.eq.s32.totalorder %s11, 0
      %p94 = por %p92, %p93
      %p95 = scmp.ne.s32.totalorder %s87, %s89
      %p96 = scmp.eq.s32.totalorder %s16, 1
      %p97 = por %p95, %p96
      %p98 = scmp.ne.s32.totalorder %s89, %s90
      %p99 = scmp.eq.s32.totalorder %s16, 0
      %p100 = por %p98, %p99
      %p101 = scmp.ne.s32.totalorder %s89, %s90
      %p102 = scmp.eq.s32.totalorder %s17, 1
      %p103 = por %p101, %p102
      %p105 = scmp.ne.s32.totalorder %s90, %s104
      %p106 = scmp.eq.s32.totalorder %s17, 0
      %p107 = por %p105, %p106
      %s109 = sadd.s32 %s108, 1
      %p112 = scmp.eq.s32.totalorder %s11, 1
      %p113 = scmp.ne.s32.totalorder %s108, %s110
      %p114 = scmp.eq.s32.totalorder %s11, 0
      %p115 = por %p113, %p114
      %p116 = scmp.ne.s32.totalorder %s108, %s110
      %p117 = scmp.eq.s32.totalorder %s16, 1
      %p118 = por %p116, %p117
      %p119 = scmp.ne.s32.totalorder %s110, %s111
      %p120 = scmp.eq.s32.totalorder %s16, 0
      %p121 = por %p119, %p120
      %p122 = scmp.ne.s32.totalorder %s110, %s111
      %p123 = scmp.eq.s32.totalorder %s17, 1
      %p124 = por %p122, %p123
      %p126 = scmp.ne.s32.totalorder %s111, %s125
      %p127 = scmp.eq.s32.totalorder %s17, 0
      %p128 = por %p126, %p127
      %s129 = ssub.s32 %s11, %s18
      %p130 = scmp.eq.s32.totalorder %s129, 0
      %s132 = sadd.s32 %s131, 1
      %s133 = scalar_select %p130, %s131, %s132
      %p136 = pneg %p130
      %p137 = scmp.eq.s32.totalorder %s11, 1
      %p138 = por %p136, %p137
      %p139 = scmp.ne.s32.totalorder %s131, %s134
      %p140 = scmp.eq.s32.totalorder %s11, 0
      %p141 = por %p139, %p140
      %p142 = scmp.ne.s32.totalorder %s131, %s134
      %p143 = scmp.eq.s32.totalorder %s16, 1
      %p144 = por %p142, %p143
      %p145 = scmp.ne.s32.totalorder %s134, %s135
      %p146 = scmp.eq.s32.totalorder %s16, 0
      %p147 = por %p145, %p146
      %p148 = scmp.ne.s32.totalorder %s134, %s135
      %p149 = scmp.eq.s32.totalorder %s17, 1
      %p150 = por %p148, %p149
      %p152 = scmp.ne.s32.totalorder %s135, %s151
      %p153 = scmp.eq.s32.totalorder %s17, 0
      %p154 = por %p152, %p153
      %p155 = scmp.le.s32.totalorder 1, %s11
      %p156 = scmp.lt.s32.totalorder %s11, 3
      %p157 = pnand %p155, %p156
      %p158 = pneg %p157
      // Predicated region
      $region9: #{tpu_custom_call.1} parent=5 // pred_check
        _
      $region10: #{tpu_custom_call.1} parent=5 // pred_check_branch
        %160 = sbr.rel (%p157) target = $region12
      $region11: #{tpu_custom_call.1} parent=5 // pred_region
        %s161 = ssub.s32 %s11, 1
        // Predicated region
        $region13: #{tpu_custom_call.1} parent=11 // pred_check
          %p162 = pneg %p58
        $region14: #{tpu_custom_call.1} parent=11 // pred_check_branch
          %164 = sbr.rel (%p162) target = $region16
        $region15: #{tpu_custom_call.1} parent=11 // pred_region
          _
        $region16: #{tpu_custom_call.1} parent=11 // pred_fallthru
          _
        // Predicated region
        $region17: #{tpu_custom_call.1} parent=11 // pred_check
          %p165 = pneg %p79
        $region18: #{tpu_custom_call.1} parent=11 // pred_check_branch
          %167 = sbr.rel (%p165) target = $region20
        $region19: #{tpu_custom_call.1} parent=11 // pred_region
          _
        $region20: #{tpu_custom_call.1} parent=11 // pred_fallthru
          _
        // Predicated region
        $region21: #{tpu_custom_call.1} parent=11 // pred_check
          %p168 = pneg %p100
        $region22: #{tpu_custom_call.1} parent=11 // pred_check_branch
          %170 = sbr.rel (%p168) target = $region24
        $region23: #{tpu_custom_call.1} parent=11 // pred_region
          _
        $region24: #{tpu_custom_call.1} parent=11 // pred_fallthru
          _
        // Predicated region
        $region25: #{tpu_custom_call.1} parent=11 // pred_check
          %p171 = pneg %p121
        $region26: #{tpu_custom_call.1} parent=11 // pred_check_branch
          %173 = sbr.rel (%p171) target = $region28
        $region27: #{tpu_custom_call.1} parent=11 // pred_region
          _
        $region28: #{tpu_custom_call.1} parent=11 // pred_fallthru
          _
      $region12: #{tpu_custom_call.1} parent=5 // pred_fallthru
        _
      %p174 = scmp.lt.s32.totalorder %s11, 2
      // Predicated region
      $region29: #{tpu_custom_call.1} parent=5 // pred_check
        %p175 = pneg %p174
      $region30: #{tpu_custom_call.1} parent=5 // pred_check_branch
        %177 = sbr.rel (%p175) target = $region32
      $region31: #{tpu_custom_call.1} parent=5 // pred_region
        // Predicated region
        $region33: #{tpu_custom_call.1} parent=31 // pred_check
          %p178 = pneg %p31
        $region34: #{tpu_custom_call.1} parent=31 // pred_check_branch
          %180 = sbr.rel (%p178) target = $region36
        $region35: #{tpu_custom_call.1} parent=31 // pred_region
          %s181 = smul.u32 13, %s11
          %s182 = ssub.s32 25, %s181
          %p183 = scmp.lt.s32.totalorder %s182, 13
          %s184 = scalar_select %p183, %s182, 13
          %s185 = smul.u32 128, %s184
          %p186 = scmp.lt.s32.totalorder %s181, 24
          %s187 = scalar_select %p186, %s181, 24
          %s188 = smul.addr %s187, 8
          %s189 = scalar_lea.vmem %s0, %s188
          %s190 = smul.u32 13, %s11
          %s191 = ssub.s32 25, %s190
          %p192 = scmp.lt.s32.totalorder %s191, 13
          %s193 = scalar_select %p192, %s191, 13
          %s194 = smul.u32 128, %s193
        $region36: #{tpu_custom_call.1} parent=31 // pred_fallthru
          _
      $region32: #{tpu_custom_call.1} parent=5 // pred_fallthru
        _
      %p195 = scmp.le.s32.totalorder 1, %s11
      %p196 = scmp.lt.s32.totalorder %s11, 3
      %p197 = pnand %p195, %p196
      %p198 = pneg %p197
      // Predicated region
      $region37: #{tpu_custom_call.1} parent=5 // pred_check
        _
      $region38: #{tpu_custom_call.1} parent=5 // pred_check_branch
        %200 = sbr.rel (%p197) target = $region40
      $region39: #{tpu_custom_call.1} parent=5 // pred_region
        %s201 = ssub.s32 %s11, 1
        %s202 = smul.u32 13, %s16
        %s203 = ssub.s32 25, %s202
        %p204 = scmp.lt.s32.totalorder %s203, 13
        %s205 = scalar_select %p204, %s203, 13
        %s206 = smul.u32 128, %s205
        %p207 = scmp.lt.s32.totalorder %s202, 24
        %s208 = scalar_select %p207, %s202, 24
        %s209 = smul.addr %s208, 8
        %s210 = scalar_lea.vmem %s0, %s209
        %p211 = pneg %p37
        %p212 = pneg %p34
        %p213 = pneg %p58
        %p214 = pneg %p55
        %p215 = pneg %p79
        %p216 = pneg %p76
        %p217 = pneg %p100
        %p218 = pneg %p97
        %p219 = pneg %p121
        %p220 = pneg %p118
        %p221 = pneg %p147
        %p222 = pneg %p144
        %s223 = sand.u32 %s134, 1
        %s224 = sand.u32 %s134, 1
        %s225 = smul.addr %s224, 104
        %s226 = scalar_lea.vmem [#allocation2], %s225
        %s227 = smul.u32 13, %s16
        %s228 = ssub.s32 25, %s227
        %p229 = scmp.lt.s32.totalorder %s228, 13
        %s230 = scalar_select %p229, %s228, 13
        %s231 = smul.u32 128, %s230
        %p232 = scmp.lt.s32.totalorder %s227, 24
        %s233 = scalar_select %p232, %s227, 24
        %s234 = smul.addr %s233, 8
        %s235 = scalar_lea.vmem %s0, %s234
        %s236 = smul.u32 13, %s16
        %s237 = ssub.s32 25, %s236
        %p238 = scmp.lt.s32.totalorder %s237, 13
        %s239 = scalar_select %p238, %s237, 13
        %s240 = smul.u32 128, %s239
        %s241 = smul.u32 13, %s16
        %s242 = ssub.s32 25, %s241
        %p243 = scmp.lt.s32.totalorder %s242, 13
        %s244 = scalar_select %p243, %s242, 13
        %s245 = smul.u32 128, %s244
        %v247 = vld [vmem:[%s235] sm:$0xff]
        %v248 = vld [vmem:[%s235 + $0x8] sm:$0xff]
        %v249 = vld [vmem:[%s235 + $0x10] sm:$0xff]
        %v250 = vld [vmem:[%s235 + $0x18] sm:$0xff]
        %v251 = vld [vmem:[%s235 + $0x20] sm:$0xff]
        %v252 = vld [vmem:[%s235 + $0x28] sm:$0xff]
        %v253 = vld [vmem:[%s235 + $0x30] sm:$0xff]
        %v254 = vld [vmem:[%s235 + $0x38] sm:$0xff]
        %v255 = vld [vmem:[%s235 + $0x40] sm:$0xff]
        %v256 = vld [vmem:[%s235 + $0x48] sm:$0xff]
        %v257 = vld [vmem:[%s235 + $0x50] sm:$0xff]
        %v258 = vld [vmem:[%s235 + $0x58] sm:$0xff]
        %v259 = vld [vmem:[%s235 + $0x60] sm:$0xff]
        %v260 = vpack.c.bf16 %v248, %v247
        %v261 = vpack.c.bf16 %v250, %v249
        %v262 = vpack.c.bf16 %v252, %v251
        %v263 = vpack.c.bf16 %v254, %v253
        %v264 = vpack.c.bf16 %v256, %v255
        %v265 = vpack.c.bf16 %v258, %v257
        %v266 = vpack.c.bf16 %v259, %v259
        %v267 = vld [vmem:[%s1] sm:$0xf]
        %v268 = vld [vmem:[%s1 + $0x4] sm:$0xf]
        %v269 = vld [vmem:[%s2] sm:$0x1]
        %v271 = vlaneseq
        %v272 = vshrl.u32 %v271, 7
        %v273 = vsub.s32 0, %v272
        %v274 = vrot.slane %v269, %v273
        %v278 = vunpack.c.l.b16 %v267
        %v279 = vunpack.c.l.b16 %v268
        %v280 = vpack.c.b16 %v279, %v278
        %vm282 = vcmask 130048
        %v284 = vsel %vm282, %v260, 0
        %v287 = vsel %vm282, %v261, 0
        %v290 = vsel %vm282, %v262, 0
        %v293 = vsel %vm282, %v263, 0
        %v296 = vsel %vm282, %v264, 0
        %v299 = vsel %vm282, %v265, 0
        %v302 = vsel %vm282, %v266, 0
        %304 = vmatprep.subr.bf16.mxu0 0
        %305 = vmatpush1.bf16.msra.mxu0 0
        %306 = vmatprep.subr.bf16.mxu0 0
        %307 = vmatpush1.bf16.msra.mxu0 0
        %308 = vmatprep.subr.bf16.mxu0 0
        %309 = vmatpush1.bf16.msra.mxu0 0
        %310 = vmatprep.subr.bf16.mxu0 0
        %311 = vmatpush1.bf16.msra.mxu0 0
        %312 = vmatprep.subr.bf16.mxu0 0
        %313 = vmatpush1.bf16.msra.mxu0 0
        %314 = vmatprep.subr.bf16.mxu0 0
        %315 = vmatpush1.bf16.msra.mxu0 0
        %316 = vmatprep.subr.bf16.mxu0 0
        %317 = vmatpush1.bf16.msra.mxu0 0
        %318 = vmatprep.subr.bf16.mxu0 0
        %319 = vmatpush1.bf16.msra.mxu0 %v280
        %320 = vmatprep.subr.bf16.mxu0 0
        %321 = vmatpush2.bf16.msra.mxu0 0
        %322 = vmatprep.subr.bf16.mxu0 0
        %323 = vmatpush2.bf16.msra.mxu0 0
        %324 = vmatprep.subr.bf16.mxu0 0
        %325 = vmatpush2.bf16.msra.mxu0 0
        %326 = vmatprep.subr.bf16.mxu0 0
        %327 = vmatpush2.bf16.msra.mxu0 0
        %328 = vmatprep.subr.bf16.mxu0 0
        %329 = vmatpush2.bf16.msra.mxu0 0
        %330 = vmatprep.subr.bf16.mxu0 0
        %331 = vmatpush2.bf16.msra.mxu0 0
        %332 = vmatprep.subr.bf16.mxu0 0
        %333 = vmatpush2.bf16.msra.mxu0 0
        %334 = vmatprep.subr.bf16.mxu0 0
        %335 = vmatpush2.bf16.msra.mxu0 0
        %336 = vmatprep.mubr.bf16.mxu0 0
        %337 = vmatmul.mubr.bf16.gmra.mxu0 %v284
        %v338 = vpop.f32.mrf.mxu0
        %v339 = vadd.f32 %v274, %v338
        %v340 = vpop.f32.mrf.mxu0
        %v341 = vpop.f32.mrf.mxu0
        %v342 = vadd.f32 %v274, %v341
        %v343 = vpop.f32.mrf.mxu0
        %344 = vmatprep.mubr.bf16.mxu0 0
        %345 = vmatmul.mubr.bf16.gmra.mxu0 %v287
        %v346 = vpop.f32.mrf.mxu0
        %v347 = vadd.f32 %v274, %v346
        %v348 = vpop.f32.mrf.mxu0
        %v349 = vpop.f32.mrf.mxu0
        %v350 = vadd.f32 %v274, %v349
        %v351 = vpop.f32.mrf.mxu0
        %352 = vmatprep.mubr.bf16.mxu0 0
        %353 = vmatmul.mubr.bf16.gmra.mxu0 %v290
        %v354 = vpop.f32.mrf.mxu0
        %v355 = vadd.f32 %v274, %v354
        %v356 = vpop.f32.mrf.mxu0
        %v357 = vpop.f32.mrf.mxu0
        %v358 = vadd.f32 %v274, %v357
        %v359 = vpop.f32.mrf.mxu0
        %360 = vmatprep.mubr.bf16.mxu0 0
        %361 = vmatmul.mubr.bf16.gmra.mxu0 %v293
        %v362 = vpop.f32.mrf.mxu0
        %v363 = vadd.f32 %v274, %v362
        %v364 = vpop.f32.mrf.mxu0
        %v365 = vpop.f32.mrf.mxu0
        %v366 = vadd.f32 %v274, %v365
        %v367 = vpop.f32.mrf.mxu0
        %368 = vmatprep.mubr.bf16.mxu0 0
        %369 = vmatmul.mubr.bf16.gmra.mxu0 %v296
        %v370 = vpop.f32.mrf.mxu0
        %v371 = vadd.f32 %v274, %v370
        %v372 = vpop.f32.mrf.mxu0
        %v373 = vpop.f32.mrf.mxu0
        %v374 = vadd.f32 %v274, %v373
        %v375 = vpop.f32.mrf.mxu0
        %376 = vmatprep.mubr.bf16.mxu0 0
        %377 = vmatmul.mubr.bf16.gmra.mxu0 %v299
        %v378 = vpop.f32.mrf.mxu0
        %v379 = vadd.f32 %v274, %v378
        %v380 = vpop.f32.mrf.mxu0
        %v381 = vpop.f32.mrf.mxu0
        %v382 = vadd.f32 %v274, %v381
        %v383 = vpop.f32.mrf.mxu0
        %384 = vmatprep.mubr.bf16.mxu0 0
        %385 = vmatmul.mubr.bf16.gmra.mxu0 %v302
        %v386 = vpop.f32.mrf.mxu0
        %v387 = vadd.f32 %v274, %v386
        %v388 = vpop.f32.mrf.mxu0
        %v389 = vpop.f32.mrf.mxu0
        %v390 = vpop.f32.mrf.mxu0
        %391 = vdwg.mxu0
        %v392 = vmax.f32 %v339, 0.0
        %v393 = vmax.f32 %v342, 0.0
        %v394 = vmax.f32 %v347, 0.0
        %v395 = vmax.f32 %v350, 0.0
        %v396 = vmax.f32 %v355, 0.0
        %v397 = vmax.f32 %v358, 0.0
        %v398 = vmax.f32 %v363, 0.0
        %v399 = vmax.f32 %v366, 0.0
        %v400 = vmax.f32 %v371, 0.0
        %v401 = vmax.f32 %v374, 0.0
        %v402 = vmax.f32 %v379, 0.0
        %v403 = vmax.f32 %v382, 0.0
        %v404 = vmax.f32 %v387, 0.0
        %v405 = vpack.c.bf16 %v393, %v392
        %v406 = vpack.c.bf16 %v395, %v394
        %v407 = vpack.c.bf16 %v397, %v396
        %v408 = vpack.c.bf16 %v399, %v398
        %v409 = vpack.c.bf16 %v401, %v400
        %v410 = vpack.c.bf16 %v403, %v402
        %v411 = vpack.c.bf16 %v404, %v404
        %v412 = vld [vmem:[%s3] sm:$0xf]
        %v413 = vld [vmem:[%s3 + $0x4] sm:$0xf]
        %v414 = vld [vmem:[%s3 + $0x8] sm:$0xf]
        %v415 = vld [vmem:[%s3 + $0xc] sm:$0xf]
        %v416 = vld [vmem:[%s4] sm:$0x1]
        %v418 = vlaneseq
        %v419 = vshrl.u32 %v418, 7
        %v420 = vsub.s32 0, %v419
        %v421 = vrot.slane %v416, %v420
        %v427 = vunpack.c.l.b16 %v412
        %v428 = vunpack.c.l.b16 %v413
        %v429 = vunpack.c.l.b16 %v414
        %v430 = vunpack.c.l.b16 %v415
        %v431 = vpack.c.b16 %v428, %v427
        %v432 = vpack.c.b16 %v430, %v429
        %vm435 = vcmask 261120
        %v437 = vsel %vm435, %v405, 0
        %v440 = vsel %vm435, %v406, 0
        %v443 = vsel %vm435, %v407, 0
        %v446 = vsel %vm435, %v408, 0
        %v449 = vsel %vm435, %v409, 0
        %v452 = vsel %vm435, %v410, 0
        %v455 = vsel %vm435, %v411, 0
        %457 = vmatprep.subr.bf16.mxu0 0
        %458 = vmatpush1.bf16.msra.mxu0 0
        %459 = vmatprep.subr.bf16.mxu0 0
        %460 = vmatpush1.bf16.msra.mxu0 0
        %461 = vmatprep.subr.bf16.mxu0 0
        %462 = vmatpush1.bf16.msra.mxu0 0
        %463 = vmatprep.subr.bf16.mxu0 0
        %464 = vmatpush1.bf16.msra.mxu0 0
        %465 = vmatprep.subr.bf16.mxu0 0
        %466 = vmatpush1.bf16.msra.mxu0 0
        %467 = vmatprep.subr.bf16.mxu0 0
        %468 = vmatpush1.bf16.msra.mxu0 0
        %469 = vmatprep.subr.bf16.mxu0 0
        %470 = vmatpush1.bf16.msra.mxu0 %v432
        %471 = vmatprep.subr.bf16.mxu0 0
        %472 = vmatpush1.bf16.msra.mxu0 %v431
        %473 = vmatprep.subr.bf16.mxu0 0
        %474 = vmatpush2.bf16.msra.mxu0 0
        %475 = vmatprep.subr.bf16.mxu0 0
        %476 = vmatpush2.bf16.msra.mxu0 0
        %477 = vmatprep.subr.bf16.mxu0 0
        %478 = vmatpush2.bf16.msra.mxu0 0
        %479 = vmatprep.subr.bf16.mxu0 0
        %480 = vmatpush2.bf16.msra.mxu0 0
        %481 = vmatprep.subr.bf16.mxu0 0
        %482 = vmatpush2.bf16.msra.mxu0 0
        %483 = vmatprep.subr.bf16.mxu0 0
        %484 = vmatpush2.bf16.msra.mxu0 0
        %485 = vmatprep.subr.bf16.mxu0 0
        %486 = vmatpush2.bf16.msra.mxu0 0
        %487 = vmatprep.subr.bf16.mxu0 0
        %488 = vmatpush2.bf16.msra.mxu0 0
        %489 = vmatprep.mubr.bf16.mxu0 0
        %490 = vmatmul.mubr.bf16.gmra.mxu0 %v437
        %v491 = vpop.f32.mrf.mxu0
        %v492 = vadd.f32 %v421, %v491
        %v493 = vpop.f32.mrf.mxu0
        %v494 = vpop.f32.mrf.mxu0
        %v495 = vadd.f32 %v421, %v494
        %v496 = vpop.f32.mrf.mxu0
        %497 = vmatprep.mubr.bf16.mxu0 0
        %498 = vmatmul.mubr.bf16.gmra.mxu0 %v440
        %v499 = vpop.f32.mrf.mxu0
        %v500 = vadd.f32 %v421, %v499
        %v501 = vpop.f32.mrf.mxu0
        %v502 = vpop.f32.mrf.mxu0
        %v503 = vadd.f32 %v421, %v502
        %v504 = vpop.f32.mrf.mxu0
        %505 = vmatprep.mubr.bf16.mxu0 0
        %506 = vmatmul.mubr.bf16.gmra.mxu0 %v443
        %v507 = vpop.f32.mrf.mxu0
        %v508 = vadd.f32 %v421, %v507
        %v509 = vpop.f32.mrf.mxu0
        %v510 = vpop.f32.mrf.mxu0
        %v511 = vadd.f32 %v421, %v510
        %v512 = vpop.f32.mrf.mxu0
        %513 = vmatprep.mubr.bf16.mxu0 0
        %514 = vmatmul.mubr.bf16.gmra.mxu0 %v446
        %v515 = vpop.f32.mrf.mxu0
        %v516 = vadd.f32 %v421, %v515
        %v517 = vpop.f32.mrf.mxu0
        %v518 = vpop.f32.mrf.mxu0
        %v519 = vadd.f32 %v421, %v518
        %v520 = vpop.f32.mrf.mxu0
        %521 = vmatprep.mubr.bf16.mxu0 0
        %522 = vmatmul.mubr.bf16.gmra.mxu0 %v449
        %v523 = vpop.f32.mrf.mxu0
        %v524 = vadd.f32 %v421, %v523
        %v525 = vpop.f32.mrf.mxu0
        %v526 = vpop.f32.mrf.mxu0
        %v527 = vadd.f32 %v421, %v526
        %v528 = vpop.f32.mrf.mxu0
        %529 = vmatprep.mubr.bf16.mxu0 0
        %530 = vmatmul.mubr.bf16.gmra.mxu0 %v452
        %v531 = vpop.f32.mrf.mxu0
        %v532 = vadd.f32 %v421, %v531
        %v533 = vpop.f32.mrf.mxu0
        %v534 = vpop.f32.mrf.mxu0
        %v535 = vadd.f32 %v421, %v534
        %v536 = vpop.f32.mrf.mxu0
        %537 = vmatprep.mubr.bf16.mxu0 0
        %538 = vmatmul.mubr.bf16.gmra.mxu0 %v455
        %v539 = vpop.f32.mrf.mxu0
        %v540 = vadd.f32 %v421, %v539
        %v541 = vpop.f32.mrf.mxu0
        %v542 = vpop.f32.mrf.mxu0
        %v543 = vpop.f32.mrf.mxu0
        %544 = vdwg.mxu0
        %vm545 = vcmask 80896
        %546 = vst.msk [vmem:[%s226] sm:$0xff] %vm545, %v492
        %547 = vst.msk [vmem:[%s226 + $0x8] sm:$0xff] %vm545, %v495
        %548 = vst.msk [vmem:[%s226 + $0x10] sm:$0xff] %vm545, %v500
        %549 = vst.msk [vmem:[%s226 + $0x18] sm:$0xff] %vm545, %v503
        %550 = vst.msk [vmem:[%s226 + $0x20] sm:$0xff] %vm545, %v508
        %551 = vst.msk [vmem:[%s226 + $0x28] sm:$0xff] %vm545, %v511
        %552 = vst.msk [vmem:[%s226 + $0x30] sm:$0xff] %vm545, %v516
        %553 = vst.msk [vmem:[%s226 + $0x38] sm:$0xff] %vm545, %v519
        %554 = vst.msk [vmem:[%s226 + $0x40] sm:$0xff] %vm545, %v524
        %555 = vst.msk [vmem:[%s226 + $0x48] sm:$0xff] %vm545, %v527
        %556 = vst.msk [vmem:[%s226 + $0x50] sm:$0xff] %vm545, %v532
        %557 = vst.msk [vmem:[%s226 + $0x58] sm:$0xff] %vm545, %v535
        %558 = vst.msk [vmem:[%s226 + $0x60] sm:$0xff] %vm545, %v540
        %s559 = sand.u32 %s134, 1
        %s560 = sand.u32 %s134, 1
        %s561 = smul.addr %s560, 104
        %s562 = scalar_lea.vmem [#allocation2], %s561
        // Predicated region
        $region41: #{tpu_custom_call.1} parent=39 // pred_check
          %p563 = pneg %p144
        $region42: #{tpu_custom_call.1} parent=39 // pred_check_branch
          %565 = sbr.rel (%p563) target = $region44
        $region43: #{tpu_custom_call.1} parent=39 // pred_region
          %s566 = smul.u32 13, %s16
          %s567 = ssub.s32 25, %s566
          %p568 = scmp.lt.s32.totalorder %s567, 13
          %s569 = scalar_select %p568, %s567, 13
          %s570 = smul.u32 128, %s569
          %p571 = scmp.ne.s32.totalorder 0, %s570
          %s572 = smul.addr %s566, 8
          %s573 = scalar_lea.vmem %s5, %s572
          // Predicated region
          $region45: #{tpu_custom_call.1} parent=43 // pred_check
            %p574 = pneg %p571
          $region46: #{tpu_custom_call.1} parent=43 // pred_check_branch
            %576 = sbr.rel (%p574) target = $region48
          $region47: #{tpu_custom_call.1} parent=43 // pred_region
            // Predicated region
            $region49: #{tpu_custom_call.1} parent=47 // pred_check
              _
            $region50: #{tpu_custom_call.1} parent=47 // pred_check_branch
              %578 = sbr.rel (0) target = $region52
            $region51: #{tpu_custom_call.1} parent=47 // pred_region
              // Predicated region
              $region71: #{tpu_custom_call.1} parent=51 // pred_check
                _
              $region72: #{tpu_custom_call.1} parent=51 // pred_check_branch
                %653 = sbr.rel (0) target = $region74
              $region73: #{tpu_custom_call.1} parent=51 // pred_region
                %s654 = sdiv.u32.pop %s569, 13
                %s655 = srem.u32.pop %s569, 13
                // While loop
                $region75: #{tpu_custom_call.1} parent=73 // loop_pre_header
                  _
                $region76: #{tpu_custom_call.1} parent=73 // loop_header
                  %s657 = sphi 0, %s659
                  %p658 = scmp.ge.s32.totalorder %s657, %s654
                  %s662 = sphi 0, %s693
                  %s663 = sphi %s562, %s696
                  %s664 = sphi %s573, %s697
                $region77: #{tpu_custom_call.1} parent=73 // loop_header_branch
                  %661 = sbr.rel (%p658) target = $region81
                $region78: #{tpu_custom_call.1} parent=73 // loop_body
                  %v665 = vld [vmem:[%s663] sm:$0xff]
                  %666 = vst [vmem:[%s664] sm:$0xff] %v665
                  %v667 = vld [vmem:[%s663 + $0x8] sm:$0xff]
                  %668 = vst [vmem:[%s664 + $0x8] sm:$0xff] %v667
                  %v669 = vld [vmem:[%s663 + $0x10] sm:$0xff]
                  %670 = vst [vmem:[%s664 + $0x10] sm:$0xff] %v669
                  %v671 = vld [vmem:[%s663 + $0x18] sm:$0xff]
                  %672 = vst [vmem:[%s664 + $0x18] sm:$0xff] %v671
                  %v673 = vld [vmem:[%s663 + $0x20] sm:$0xff]
                  %674 = vst [vmem:[%s664 + $0x20] sm:$0xff] %v673
                  %v675 = vld [vmem:[%s663 + $0x28] sm:$0xff]
                  %676 = vst [vmem:[%s664 + $0x28] sm:$0xff] %v675
                  %v677 = vld [vmem:[%s663 + $0x30] sm:$0xff]
                  %678 = vst [vmem:[%s664 + $0x30] sm:$0xff] %v677
                  %v679 = vld [vmem:[%s663 + $0x38] sm:$0xff]
                  %680 = vst [vmem:[%s664 + $0x38] sm:$0xff] %v679
                  %v681 = vld [vmem:[%s663 + $0x40] sm:$0xff]
                  %682 = vst [vmem:[%s664 + $0x40] sm:$0xff] %v681
                  %v683 = vld [vmem:[%s663 + $0x48] sm:$0xff]
                  %684 = vst [vmem:[%s664 + $0x48] sm:$0xff] %v683
                  %v685 = vld [vmem:[%s663 + $0x50] sm:$0xff]
                  %686 = vst [vmem:[%s664 + $0x50] sm:$0xff] %v685
                  %v687 = vld [vmem:[%s663 + $0x58] sm:$0xff]
                  %688 = vst [vmem:[%s664 + $0x58] sm:$0xff] %v687
                  %v689 = vld [vmem:[%s663 + $0x60] sm:$0xff]
                  %690 = vst [vmem:[%s664 + $0x60] sm:$0xff] %v689
                  %s691 = sadd.s32 1, %s662
                  %p692 = scmp.ge.s32.totalorder %s691, %s654
                  %s693 = scalar_select %p692, 0, %s691
                  %s694 = smul.u32 %s693, 104
                  %s695 = smul.u32 %s693, 104
                  %s696 = scalar_lea.vmem %s562, %s694 [#allocation2]
                  %s697 = scalar_lea.vmem %s573, %s695
                $region79: #{tpu_custom_call.1} parent=73 // loop_footer
                  %s659 = sadd.s32 %s657, 1
                $region80: #{tpu_custom_call.1} parent=73 // loop_footer_branch
                  %656 = sbr.rel target = $region76
                $region81: #{tpu_custom_call.1} parent=73 // loop_exit
                  _
                %s698 = sdiv.u32.pop %s569, 13
                %s699 = srem.u32.pop %s569, 13
                %s700 = smul.u32 %s698, 13
                %s701 = smul.u32 8, %s700
                %s702 = scalar_lea.vmem %s562, %s701 [#allocation2]
                %s703 = smul.u32 8, %s700
                %s704 = scalar_lea.vmem %s573, %s703
                // While loop
                $region82: #{tpu_custom_call.1} parent=73 // loop_pre_header
                  _
                $region83: #{tpu_custom_call.1} parent=73 // loop_header
                  %s706 = sphi 0, %s708
                  %p707 = scmp.ge.s32.totalorder %s706, %s699
                  %s711 = sphi 0, %s718
                  %s712 = sphi %s702, %s721
                  %s713 = sphi %s704, %s722
                $region84: #{tpu_custom_call.1} parent=73 // loop_header_branch
                  %710 = sbr.rel (%p707) target = $region88
                $region85: #{tpu_custom_call.1} parent=73 // loop_body
                  %v714 = vld [vmem:[%s712] sm:$0xff]
                  %715 = vst [vmem:[%s713] sm:$0xff] %v714
                  %s716 = sadd.s32 1, %s711
                  %p717 = scmp.ge.s32.totalorder %s716, %s699
                  %s718 = scalar_select %p717, 0, %s716
                  %s719 = smul.u32 %s718, 8
                  %s720 = smul.u32 %s718, 8
                  %s721 = scalar_lea.vmem %s702, %s719 [#allocation2]
                  %s722 = scalar_lea.vmem %s704, %s720
                $region86: #{tpu_custom_call.1} parent=73 // loop_footer
                  %s708 = sadd.s32 %s706, 1
                $region87: #{tpu_custom_call.1} parent=73 // loop_footer_branch
                  %705 = sbr.rel target = $region83
                $region88: #{tpu_custom_call.1} parent=73 // loop_exit
                  _
              $region74: #{tpu_custom_call.1} parent=51 // pred_fallthru
                _
              // Predicated region
              $region89: #{tpu_custom_call.1} parent=51 // pred_check
                _
              $region90: #{tpu_custom_call.1} parent=51 // pred_check_branch
                %724 = sbr.rel target = $region92
              $region91: #{tpu_custom_call.1} parent=51 // pred_region
                _
              $region92: #{tpu_custom_call.1} parent=51 // pred_fallthru
                _
            $region52: #{tpu_custom_call.1} parent=47 // pred_fallthru
              _
            // Predicated region
            $region53: #{tpu_custom_call.1} parent=47 // pred_check
              _
            $region54: #{tpu_custom_call.1} parent=47 // pred_check_branch
              %580 = sbr.rel target = $region56
            $region55: #{tpu_custom_call.1} parent=47 // pred_region
              %s582 = ssub.s32 256, 1
              %s583 = sdiv.u32.pop %s569, 13
              %s584 = srem.u32.pop %s569, 13
              // While loop
              $region57: #{tpu_custom_call.1} parent=55 // loop_pre_header
                _
              $region58: #{tpu_custom_call.1} parent=55 // loop_header
                %s586 = sphi 0, %s588
                %p587 = scmp.ge.s32.totalorder %s586, %s583
                %s591 = sphi 0, %s622
                %s592 = sphi %s562, %s625
                %s593 = sphi %s573, %s626
              $region59: #{tpu_custom_call.1} parent=55 // loop_header_branch
                %590 = sbr.rel (%p587) target = $region63
              $region60: #{tpu_custom_call.1} parent=55 // loop_body
                %v594 = vld [vmem:[%s592] sm:%s582]
                %595 = vst [vmem:[%s593] sm:%s582] %v594
                %v596 = vld [vmem:[%s592 + $0x8] sm:%s582]
                %597 = vst [vmem:[%s593 + $0x8] sm:%s582] %v596
                %v598 = vld [vmem:[%s592 + $0x10] sm:%s582]
                %599 = vst [vmem:[%s593 + $0x10] sm:%s582] %v598
                %v600 = vld [vmem:[%s592 + $0x18] sm:%s582]
                %601 = vst [vmem:[%s593 + $0x18] sm:%s582] %v600
                %v602 = vld [vmem:[%s592 + $0x20] sm:%s582]
                %603 = vst [vmem:[%s593 + $0x20] sm:%s582] %v602
                %v604 = vld [vmem:[%s592 + $0x28] sm:%s582]
                %605 = vst [vmem:[%s593 + $0x28] sm:%s582] %v604
                %v606 = vld [vmem:[%s592 + $0x30] sm:%s582]
                %607 = vst [vmem:[%s593 + $0x30] sm:%s582] %v606
                %v608 = vld [vmem:[%s592 + $0x38] sm:%s582]
                %609 = vst [vmem:[%s593 + $0x38] sm:%s582] %v608
                %v610 = vld [vmem:[%s592 + $0x40] sm:%s582]
                %611 = vst [vmem:[%s593 + $0x40] sm:%s582] %v610
                %v612 = vld [vmem:[%s592 + $0x48] sm:%s582]
                %613 = vst [vmem:[%s593 + $0x48] sm:%s582] %v612
                %v614 = vld [vmem:[%s592 + $0x50] sm:%s582]
                %615 = vst [vmem:[%s593 + $0x50] sm:%s582] %v614
                %v616 = vld [vmem:[%s592 + $0x58] sm:%s582]
                %617 = vst [vmem:[%s593 + $0x58] sm:%s582] %v616
                %v618 = vld [vmem:[%s592 + $0x60] sm:%s582]
                %619 = vst [vmem:[%s593 + $0x60] sm:%s582] %v618
                %s620 = sadd.s32 1, %s591
                %p621 = scmp.ge.s32.totalorder %s620, %s583
                %s622 = scalar_select %p621, 0, %s620
                %s623 = smul.u32 %s622, 104
                %s624 = smul.u32 %s622, 104
                %s625 = scalar_lea.vmem %s562, %s623 [#allocation2]
                %s626 = scalar_lea.vmem %s573, %s624
              $region61: #{tpu_custom_call.1} parent=55 // loop_footer
                %s588 = sadd.s32 %s586, 1
              $region62: #{tpu_custom_call.1} parent=55 // loop_footer_branch
                %585 = sbr.rel target = $region58
              $region63: #{tpu_custom_call.1} parent=55 // loop_exit
                _
              %s627 = sdiv.u32.pop %s569, 13
              %s628 = srem.u32.pop %s569, 13
              %s629 = smul.u32 %s627, 13
              %s630 = smul.u32 8, %s629
              %s631 = scalar_lea.vmem %s562, %s630 [#allocation2]
              %s632 = smul.u32 8, %s629
              %s633 = scalar_lea.vmem %s573, %s632
              // While loop
              $region64: #{tpu_custom_call.1} parent=55 // loop_pre_header
                _
              $region65: #{tpu_custom_call.1} parent=55 // loop_header
                %s635 = sphi 0, %s637
                %p636 = scmp.ge.s32.totalorder %s635, %s628
                %s640 = sphi 0, %s647
                %s641 = sphi %s631, %s650
                %s642 = sphi %s633, %s651
              $region66: #{tpu_custom_call.1} parent=55 // loop_header_branch
                %639 = sbr.rel (%p636) target = $region70
              $region67: #{tpu_custom_call.1} parent=55 // loop_body
                %v643 = vld [vmem:[%s641] sm:%s582]
                %644 = vst [vmem:[%s642] sm:%s582] %v643
                %s645 = sadd.s32 1, %s640
                %p646 = scmp.ge.s32.totalorder %s645, %s628
                %s647 = scalar_select %p646, 0, %s645
                %s648 = smul.u32 %s647, 8
                %s649 = smul.u32 %s647, 8
                %s650 = scalar_lea.vmem %s631, %s648 [#allocation2]
                %s651 = scalar_lea.vmem %s633, %s649
              $region68: #{tpu_custom_call.1} parent=55 // loop_footer
                %s637 = sadd.s32 %s635, 1
              $region69: #{tpu_custom_call.1} parent=55 // loop_footer_branch
                %634 = sbr.rel target = $region65
              $region70: #{tpu_custom_call.1} parent=55 // loop_exit
                _
            $region56: #{tpu_custom_call.1} parent=47 // pred_fallthru
              _
          $region48: #{tpu_custom_call.1} parent=43 // pred_fallthru
            _
          %725 = vnop
        $region44: #{tpu_custom_call.1} parent=39 // pred_fallthru
          _
      $region40: #{tpu_custom_call.1} parent=5 // pred_fallthru
        _
      %p726 = scmp.le.s32.totalorder 2, %s11
      // Predicated region
      $region93: #{tpu_custom_call.1} parent=5 // pred_check
        %p727 = pneg %p726
      $region94: #{tpu_custom_call.1} parent=5 // pred_check_branch
        %729 = sbr.rel (%p727) target = $region96
      $region95: #{tpu_custom_call.1} parent=5 // pred_region
        %s730 = ssub.s32 %s11, 2
        // Predicated region
        $region97: #{tpu_custom_call.1} parent=95 // pred_check
          %p731 = pneg %p150
        $region98: #{tpu_custom_call.1} parent=95 // pred_check_branch
          %733 = sbr.rel (%p731) target = $region100
        $region99: #{tpu_custom_call.1} parent=95 // pred_region
          %s734 = sand.u32 %s135, 1
          %s735 = sand.u32 %s135, 1
          %s736 = smul.addr %s735, 104
          %s737 = scalar_lea.vmem [#allocation2], %s736
        $region100: #{tpu_custom_call.1} parent=95 // pred_fallthru
          _
      $region96: #{tpu_custom_call.1} parent=5 // pred_fallthru
        _
    $region6: #{tpu_custom_call.1} parent=1 // loop_footer
      %s15 = sadd.s32 1, %s11
    $region7: #{tpu_custom_call.1} parent=1 // loop_footer_branch
      %10 = sbr.rel target = $region3
    $region8: #{tpu_custom_call.1} parent=1 // loop_exit
      _

</llo_original>
